<compile_context>
chip_gen: v7x
topology: tpu7x:2x2x1
jax: 0.10.0
libtpu: 0.0.40
codegen_flags: <defaults>
</compile_context>

<pallas_src>
import jax
import jax.numpy as jnp
from jax.experimental import pallas as pl
from jax.experimental.pallas import tpu as pltpu


def _split_kernel(x_ref, out_ref):
    # x_ref: (N, 3, H*W) in VMEM; out_ref: (3, N, H*W) in VMEM.
    # Slice the input Ref directly with a static channel index (strided
    # sublane load) and store each channel as a lane-dense (N, H*W) slab into
    # a single contiguous output buffer. No full-tile load, no XLU relayout.
    for c in range(3):
        out_ref[c, :, :] = x_ref[:, c, :]


def model_forward(x):
    """Mirrors Model.forward: returns (concatenated_tensor, (split0, split1, split2))."""
    N, C, H, W = x.shape
    assert C == 3, "module splits the channel dim into [1, 1, 1]"
    HW = H * W

    # Lane-dense view: last dim H*W (=256 for the test shape) maps onto lanes.
    x_flat = x.reshape(N, C, HW)
    itemsize = jnp.dtype(x.dtype).itemsize

    # Single grid point, full-array blocks (block dims equal the full array
    # dims, so the (8,128) tiling constraint is satisfied). One combined
    # output buffer -> one writeback DMA stream.
    #
    # TODO(synk): scaled-out path for large N/H*W — grid over N with
    # dimension_semantics=("parallel",), block_n a multiple of 8 (f32), input
    # block (block_n, 3, HW) + combined output block (3, block_n, HW) sized so
    # (in + out) x 2 buffers stays ~2-4 MiB on v7x (64 MiB VMEM, 2 TCs; set
    # vmem_limit_bytes explicitly) and several MiB on v6e/v5e (128 MiB VMEM),
    # keeping the single lane-dense output stream.
    out = pl.pallas_call(
        _split_kernel,
        out_shape=jax.ShapeDtypeStruct((C, N, HW), x.dtype),
        grid=(1,),
        in_specs=[pl.BlockSpec((N, C, HW), lambda i: (0, 0, 0))],
        out_specs=pl.BlockSpec((C, N, HW), lambda i: (0, 0, 0)),
        compiler_params=pltpu.CompilerParams(
            dimension_semantics=("arbitrary",),
        ),
        cost_estimate=pl.CostEstimate(
            flops=0,
            transcendentals=0,
            bytes_accessed=2 * N * C * HW * itemsize,
        ),
    )(x_flat)

    splits = tuple(out[c].reshape(N, 1, H, W) for c in range(C))

    # concat of the [1,1,1] channel splits along dim 1 is bit-identical to the
    # input; JAX arrays are immutable, so returning the input itself is a safe
    # zero-copy alias (no HBM write). Caveat: `cat` aliases the caller's input
    # buffer — do not donate/overwrite x expecting `cat` to be independent.
    cat = x
    return cat, splits


def init_params(key):
    """Deterministic init of the (unused) Conv2d parameters from __init__."""
    keys = jax.random.split(key, 6)
    params = {
        # Conv2d(3, 3, 5, padding=(2,3), stride=(2,3)) -> weight (3,3,5,5), bias (3,)
        "conv0_w": jax.random.normal(keys[0], (3, 3, 5, 5), jnp.float32) * 0.1,
        "conv0_b": jax.random.normal(keys[1], (3,), jnp.float32) * 0.1,
        # Conv2d(3, 3, 3) -> weight (3,3,3,3), bias (3,)
        "conv1_w": jax.random.normal(keys[2], (3, 3, 3, 3), jnp.float32) * 0.1,
        "conv1_b": jax.random.normal(keys[3], (3,), jnp.float32) * 0.1,
        # Conv2d(3, 3, 3) -> weight (3,3,3,3), bias (3,)
        "conv2_w": jax.random.normal(keys[4], (3, 3, 3, 3), jnp.float32) * 0.1,
        "conv2_b": jax.random.normal(keys[5], (3,), jnp.float32) * 0.1,
    }
    return params


if __name__ == "__main__":
    key = jax.random.PRNGKey(0)
    k_param, k_x = jax.random.split(key)

    _ = init_params(k_param)  # parameters exist in the module but are unused in forward

    # Small NCHW input consistent with Conv2d(3, ...) channel count.
    x = jax.random.normal(k_x, (2, 3, 16, 16), dtype=jnp.float32)

    cat, splits = model_forward(x)
    jax.block_until_ready((cat, splits))

    # Semantics check: concatenated splits == original, splits == channel slices.
    assert jnp.array_equal(cat, x)
    assert jnp.array_equal(splits[0], x[:, 0:1])
    assert jnp.array_equal(splits[1], x[:, 1:2])
    assert jnp.array_equal(splits[2], x[:, 2:3])

    print("KERNEL_OK")
</pallas_src>

<mosaic_0001>
module attributes {stable_mosaic.version = 11 : i64} {
  func.func @_split_kernel(%arg0: i32, %arg1: memref<2x3x256xf32, #tpu.memory_space<vmem>>, %arg2: memref<3x2x256xf32, #tpu.memory_space<vmem>>) attributes {dimension_semantics = [#tpu.dimension_semantics<arbitrary>], iteration_bounds = array<i64: 1>, scalar_prefetch = 0 : i64, scratch_operands = 0 : i64, tpu.core_type = #tpu.core_type<tc>, window_params = [{pipeline_mode = #tpu.pipeline_mode<synchronous>, transform_indices = @transform_0, window_bounds = array<i64: 2, 3, 256>}, {pipeline_mode = #tpu.pipeline_mode<synchronous>, transform_indices = @transform_1, window_bounds = array<i64: 3, 2, 256>}]} {
    %c0 = arith.constant 0 : index
    %c0_0 = arith.constant 0 : index
    %c0_1 = arith.constant 0 : index
    %0 = vector.load %arg1[%c0, %c0_0, %c0_1] : memref<2x3x256xf32, #tpu.memory_space<vmem>>, vector<2x1x256xf32>
    %1 = vector.shape_cast %0 : vector<2x1x256xf32> to vector<2x256xf32>
    %c0_2 = arith.constant 0 : index
    %c0_3 = arith.constant 0 : index
    %c0_4 = arith.constant 0 : index
    %2 = vector.load %arg2[%c0_2, %c0_3, %c0_4] : memref<3x2x256xf32, #tpu.memory_space<vmem>>, vector<1x2x256xf32>
    %3 = vector.shape_cast %2 : vector<1x2x256xf32> to vector<2x256xf32>
    %4 = vector.shape_cast %1 : vector<2x256xf32> to vector<1x2x256xf32>
    tpu.vector_store %arg2[%c0_2, %c0_3, %c0_4], %4 {strides = array<i32>} : memref<3x2x256xf32, #tpu.memory_space<vmem>>, vector<1x2x256xf32>,
    %c0_5 = arith.constant 0 : index
    %c1 = arith.constant 1 : index
    %c0_6 = arith.constant 0 : index
    %5 = vector.load %arg1[%c0_5, %c1, %c0_6] : memref<2x3x256xf32, #tpu.memory_space<vmem>>, vector<2x1x256xf32>
    %6 = vector.shape_cast %5 : vector<2x1x256xf32> to vector<2x256xf32>
    %c1_7 = arith.constant 1 : index
    %c0_8 = arith.constant 0 : index
    %c0_9 = arith.constant 0 : index
    %7 = vector.load %arg2[%c1_7, %c0_8, %c0_9] : memref<3x2x256xf32, #tpu.memory_space<vmem>>, vector<1x2x256xf32>
    %8 = vector.shape_cast %7 : vector<1x2x256xf32> to vector<2x256xf32>
    %9 = vector.shape_cast %6 : vector<2x256xf32> to vector<1x2x256xf32>
    tpu.vector_store %arg2[%c1_7, %c0_8, %c0_9], %9 {strides = array<i32>} : memref<3x2x256xf32, #tpu.memory_space<vmem>>, vector<1x2x256xf32>,
    %c0_10 = arith.constant 0 : index
    %c2 = arith.constant 2 : index
    %c0_11 = arith.constant 0 : index
    %10 = vector.load %arg1[%c0_10, %c2, %c0_11] : memref<2x3x256xf32, #tpu.memory_space<vmem>>, vector<2x1x256xf32>
    %11 = vector.shape_cast %10 : vector<2x1x256xf32> to vector<2x256xf32>
    %c2_12 = arith.constant 2 : index
    %c0_13 = arith.constant 0 : index
    %c0_14 = arith.constant 0 : index
    %12 = vector.load %arg2[%c2_12, %c0_13, %c0_14] : memref<3x2x256xf32, #tpu.memory_space<vmem>>, vector<1x2x256xf32>
    %13 = vector.shape_cast %12 : vector<1x2x256xf32> to vector<2x256xf32>
    %14 = vector.shape_cast %11 : vector<2x256xf32> to vector<1x2x256xf32>
    tpu.vector_store %arg2[%c2_12, %c0_13, %c0_14], %14 {strides = array<i32>} : memref<3x2x256xf32, #tpu.memory_space<vmem>>, vector<1x2x256xf32>,
    return
  }
  func.func @transform_0(%arg0: i32) -> (i32, i32, i32) {
    %c0_i32 = arith.constant 0 : i32
    %c0_i32_0 = arith.constant 0 : i32
    %c0_i32_1 = arith.constant 0 : i32
    %c0_i32_2 = arith.constant 0 : i32
    return %c0_i32, %c0_i32_0, %c0_i32_1 : i32, i32, i32
  }
  func.func @transform_1(%arg0: i32) -> (i32, i32, i32) {
    %c0_i32 = arith.constant 0 : i32
    %c0_i32_0 = arith.constant 0 : i32
    %c0_i32_1 = arith.constant 0 : i32
    %c0_i32_2 = arith.constant 0 : i32
    return %c0_i32, %c0_i32_0, %c0_i32_1 : i32, i32, i32
  }
}

</mosaic_0001>

<llo_original>
// kernel: tpu_custom_call.1
$region0: #{tpu_custom_call.1}
  #allocation0 [shape = 'u32[]', space=smem, size = 0x4, offset = 0x4, fixed_abs, tag = 'smem constant byte address 0x4 - core index']
  #allocation1 [shape = 'u32[144,128]{1,0:T(1,128)}', space=vmem, size = 0x12000, scoped, tag = 'internal scratch']
  %s0 = inlined_call_operand.vmem [shape: f32[2,3,256], index: 0, kind: input, shape index: {}]
  %s1 = inlined_call_operand.hbm [shape: f32[3,2,256], index: 1, kind: output, shape index: {}]
  %s2 = sld [smem:[#allocation0]]
  $region14: #{tpu_custom_call.1} parent=0
    _
  %s4 = ssub.s32 1, %s2
  %s5 = scalar_select 0, %s4, %s2
  $region1: #{tpu_custom_call.1} parent=0
    #allocation2 [shape = 'u8[6144]{0}', space=vmem, size = 0x1800, scoped, tag = 'output window, operand 0, single buffered']
    #allocation3 [shape = 's32[1]{0}', space=sflag, size = 0x4, scoped, tag = 'scoped memory for tpu_custom_call.1']
    %6 = vsyncpa [#allocation3], 0
    // Predicated region
    $region2: #{tpu_custom_call.1} parent=1 // pred_check
      _
    $region3: #{tpu_custom_call.1} parent=1 // pred_check_branch
      %8 = sbr.rel (0) target = $region5
    $region4: #{tpu_custom_call.1} parent=1 // pred_region
      _
    $region5: #{tpu_custom_call.1} parent=1 // pred_fallthru
      _
    %v9 = vld [vmem:[%s0] ss:$4 sm:$0x3]
    %s10 = scalar_lea.vmem %s0, 8
    %v11 = vld [vmem:[%s10] ss:$4 sm:$0x3]
    %v14 = vcombine.low %v9, %v11
    %v16 = vunpack.c.l.s4 1935823168
    %v17 = vunpack.c.0.s8 %v16
    %v18 = vlaneseq
    %v19 = vshrl.u32 %v18, 7
    %v20 = vsub.s32 %v17, %v19
    %v21 = vrot.slane %v14, %v20
    %23 = vst [vmem:[#allocation2] sm:$0xf] %v21
    %s24 = scalar_lea.vmem %s0, 1
    %v25 = vld [vmem:[%s24] ss:$4 sm:$0x3]
    %s26 = scalar_lea.vmem %s0, 9
    %v27 = vld [vmem:[%s26] ss:$4 sm:$0x3]
    %v30 = vcombine.low %v25, %v27
    %v32 = vunpack.c.l.s4 1935823168
    %v33 = vunpack.c.0.s8 %v32
    %v34 = vlaneseq
    %v35 = vshrl.u32 %v34, 7
    %v36 = vsub.s32 %v33, %v35
    %v37 = vrot.slane %v30, %v36
    %s39 = scalar_lea.vmem [#allocation2], 4
    %40 = vst [vmem:[%s39] sm:$0xf] %v37
    %s41 = scalar_lea.vmem %s0, 2
    %v42 = vld [vmem:[%s41] ss:$4 sm:$0x3]
    %s43 = scalar_lea.vmem %s0, 10
    %v44 = vld [vmem:[%s43] ss:$4 sm:$0x3]
    %v47 = vcombine.low %v42, %v44
    %v49 = vunpack.c.l.s4 1935823168
    %v50 = vunpack.c.0.s8 %v49
    %v51 = vlaneseq
    %v52 = vshrl.u32 %v51, 7
    %v53 = vsub.s32 %v50, %v52
    %v54 = vrot.slane %v47, %v53
    %s56 = scalar_lea.vmem [#allocation2], 8
    %57 = vst [vmem:[%s56] sm:$0xf] %v54
    // Predicated region
    $region6: #{tpu_custom_call.1} parent=1 // pred_check
      _
    $region7: #{tpu_custom_call.1} parent=1 // pred_check_branch
      %59 = sbr.rel (0) target = $region9
    $region8: #{tpu_custom_call.1} parent=1 // pred_region
      %s61 = ssub.s32 192, 192
      %62 = vsyncadd [#allocation3], %s61
      %s63 = sshll.u32 [#allocation2], 4
      %s64 = int_to_ptr.vmem [resolvable:$true] %s63
      %69 = dma.vmem_to_hbm [thread:$0]  %s64, 192, %s1, [#allocation3], 64, 64, 4
    $region9: #{tpu_custom_call.1} parent=1 // pred_fallthru
      _
    // Predicated region
    $region10: #{tpu_custom_call.1} parent=1 // pred_check
      _
    $region11: #{tpu_custom_call.1} parent=1 // pred_check_branch
      %71 = sbr.rel (0) target = $region13
    $region12: #{tpu_custom_call.1} parent=1 // pred_region
      %72 = dma.done [#allocation3], 192
    $region13: #{tpu_custom_call.1} parent=1 // pred_fallthru
      _
    %73 = vsyncpa [#allocation3], 1

</llo_original>
